<compile_context>
chip_gen: v5e
topology: v5e:2x2
jax: 0.10.0
libtpu: 0.0.40
codegen_flags: <defaults>
</compile_context>

<pallas_src>
import jax
import jax.numpy as jnp
from jax import lax
from jax.experimental import pallas as pl
from jax.experimental.pallas import tpu as pltpu

EPS = 1e-5
MM_DTYPE = jnp.bfloat16       # matmul operand dtype (f32 accumulation)


def _round_up(v, m):
    return (v + m - 1) // m * m


def _vmem_limit_bytes():
    """Per-generation scoped VMEM limit (~3/4 physical, clamped 32-96 MiB)."""
    cap = 64 * 1024 * 1024
    try:
        cap = int(pltpu.get_tpu_info().vmem_capacity_bytes)
    except Exception:
        pass
    return int(min(96 * 1024 * 1024, max(32 * 1024 * 1024, (cap * 3) // 4)))


def _make_down_kernel(Hh, Wh, margin, Cp_in, Cp_mid, Cp_out):
    L = Hh * Wh
    inv_n = 1.0 / float(L)

    def kernel(x_ref, w1_ref, g1_ref, b1_ref, w2_ref, g2_ref, b2_ref,
               mask_ref, out_ref, scr1, scr2):
        # Column-boundary masks (0/1 in MM_DTYPE), precomputed in the wrapper.
        m_left = mask_ref[0:1, :]     # source column j-1 exists
        m_right = mask_ref[1:2, :]    # source column j+1 exists

        def conv3x3(act_mm, scr, w_ref, Cp):
            # scr: (3*Cp, L + 2*margin) bf16 halo scratch; bands stacked on
            # sublanes as [dx=0 | dx=1 | dx=2].
            # Zero ONLY the Wh-wide halo bands actually read by the +/-Wh row
            # shifts (re-done every step: scratch is uninitialized per-core).
            z = jnp.zeros((3 * Cp, Wh), MM_DTYPE)
            scr[:, margin - Wh:margin] = z
            scr[:, margin + L:margin + L + Wh] = z

            # Center (dx=1) band.
            scr[Cp:2 * Cp, margin:margin + L] = act_mm
            # dx=0 band: activation shifted by -1 column, masked at the left
            # image border (the zero halo supplies lane margin-1).
            scr[0:Cp, margin:margin + L] = (
                scr[Cp:2 * Cp, margin - 1:margin - 1 + L] * m_left)
            # dx=2 band: +1 column, masked at the right image border.
            scr[2 * Cp:3 * Cp, margin:margin + L] = (
                scr[Cp:2 * Cp, margin + 1:margin + 1 + L] * m_right)

            # Three accumulating MXU matmuls (one per ky), K = 3*Cp each.
            # The +/-Wh row shifts read the zero halo at the top/bottom rows.
            acc = jnp.dot(w_ref[0], scr[:, margin - Wh:margin - Wh + L],
                          preferred_element_type=jnp.float32)
            acc = acc + jnp.dot(w_ref[1], scr[:, margin:margin + L],
                                preferred_element_type=jnp.float32)
            acc = acc + jnp.dot(w_ref[2], scr[:, margin + Wh:margin + Wh + L],
                                preferred_element_type=jnp.float32)
            return acc                                   # (C_out_p, L) f32

        def inorm_relu(a, g, b):
            # Two-pass (shifted-mean) InstanceNorm stats in f32; biased var,
            # eps=1e-5, affine, fused ReLU.  (d = a - mean is reused below.)
            m = jnp.sum(a, axis=1, keepdims=True) * inv_n
            d = a - m
            v = jnp.sum(d * d, axis=1, keepdims=True) * inv_n
            y = d * lax.rsqrt(v + EPS)
            return jnp.maximum(y * g + b, 0.0)

        # x_ref already holds the pooled, bf16, channel-padded image.
        y1 = inorm_relu(conv3x3(x_ref[...], scr1, w1_ref, Cp_in),
                        g1_ref[...], b1_ref[...])          # (Cp_mid, L) f32
        y2 = inorm_relu(conv3x3(y1.astype(MM_DTYPE), scr2, w2_ref, Cp_mid),
                        g2_ref[...], b2_ref[...])          # (Cp_out, L) f32
        out_ref[...] = y2.astype(out_ref.dtype)

    return kernel


def _pack_w(w, ci_p, co_p, dtype):
    """w (O, I, 3, 3) -> slab (3, co_p, 3*ci_p); slab[ky, o, kx*ci_p + c]."""
    co, ci = w.shape[0], w.shape[1]
    slab = jnp.zeros((3, co_p, 3, ci_p), jnp.float32)
    slab = slab.at[:, :co, :, :ci].set(
        jnp.transpose(w.astype(jnp.float32), (2, 0, 3, 1)))   # (ky, o, kx, c)
    return slab.reshape(3, co_p, 3 * ci_p).astype(dtype)


def _pack_affine(g, b, cp):
    gc = jnp.zeros((cp, 1), jnp.float32).at[:g.shape[0], 0].set(
        g.astype(jnp.float32))
    bc = jnp.zeros((cp, 1), jnp.float32).at[:b.shape[0], 0].set(
        b.astype(jnp.float32))
    return gc, bc


def down_pallas(x, w1, g1, b1, w2, g2, b2):
    N, C_in, H, W = x.shape
    C_mid = w1.shape[0]
    C_out = w2.shape[0]
    Hh, Wh = H // 2, W // 2
    L = Hh * Wh

    # Channel padding: bf16 scratch bands are indexed at multiples of the
    # (packed) channel count -> round the bf16-band strides to 16; the f32
    # output only needs the 8-row sublane multiple (so C_out=8 needs no slice).
    Cp_in = _round_up(C_in, 16)
    Cp_mid = _round_up(C_mid, 16)
    Cp_out = _round_up(C_out, 8)
    margin = _round_up(Wh, 128)      # halo >= Wh, keeps the interior lane-aligned

    # ---- wrapper: MaxPool2d(2) + layout packing (cheap, outside the kernel) --
    pooled = lax.reduce_window(x.astype(jnp.float32), -jnp.inf, lax.max,
                               (1, 1, 2, 2), (1, 1, 2, 2), "VALID")
    pooled = pooled.reshape(N, C_in, L).astype(MM_DTYPE)       # lane-dense
    if Cp_in != C_in:
        pooled = jnp.pad(pooled, ((0, 0), (0, Cp_in - C_in), (0, 0)))

    w1s = _pack_w(w1, Cp_in, Cp_mid, MM_DTYPE)
    w2s = _pack_w(w2, Cp_mid, Cp_out, MM_DTYPE)
    g1c, b1c = _pack_affine(g1, b1, Cp_mid)
    g2c, b2c = _pack_affine(g2, b2, Cp_out)

    # W-border masks for the flat-shift taps (1.0 = source column valid).
    jj = jnp.arange(L, dtype=jnp.int32) % Wh
    masks = jnp.stack([(jj >= 1), (jj <= Wh - 2)]).astype(MM_DTYPE)   # (2, L)

    kernel = _make_down_kernel(Hh, Wh, margin, Cp_in, Cp_mid, Cp_out)

    grid_spec = pltpu.PrefetchScalarGridSpec(
        num_scalar_prefetch=0,
        grid=(N,),
        in_specs=[
            pl.BlockSpec((None, Cp_in, L), lambda b: (b, 0, 0)),
            pl.BlockSpec((3, Cp_mid, 3 * Cp_in), lambda b: (0, 0, 0)),
            pl.BlockSpec((Cp_mid, 1), lambda b: (0, 0)),
            pl.BlockSpec((Cp_mid, 1), lambda b: (0, 0)),
            pl.BlockSpec((3, Cp_out, 3 * Cp_mid), lambda b: (0, 0, 0)),
            pl.BlockSpec((Cp_out, 1), lambda b: (0, 0)),
            pl.BlockSpec((Cp_out, 1), lambda b: (0, 0)),
            pl.BlockSpec((2, L), lambda b: (0, 0)),
        ],
        out_specs=pl.BlockSpec((None, Cp_out, L), lambda b: (b, 0, 0)),
        scratch_shapes=[
            pltpu.VMEM((3 * Cp_in, L + 2 * margin), MM_DTYPE),   # conv1 bands
            pltpu.VMEM((3 * Cp_mid, L + 2 * margin), MM_DTYPE),  # conv2 bands
        ],
    )

    out_flat = pl.pallas_call(
        kernel,
        out_shape=jax.ShapeDtypeStruct((N, Cp_out, L), jnp.float32),
        grid_spec=grid_spec,
        compiler_params=pltpu.CompilerParams(
            dimension_semantics=("parallel",),       # v7x: shard batch on 2 TCs
            vmem_limit_bytes=_vmem_limit_bytes(),
        ),
    )(pooled, w1s, g1c, b1c, w2s, g2c, b2c, masks)

    out = out_flat.reshape(N, Cp_out, Hh, Wh)
    if Cp_out != C_out:
        out = out[:, :C_out]
    return out


def down_reference(x, w1, g1, b1, w2, g2, b2, conv_dtype=jnp.float32):
    """Pure-JAX reference mirroring the PyTorch module.

    conv_dtype lets the reference use the same conv operand precision as the
    kernel (bf16 operands, f32 accumulation) for a tight structural check.
    """
    p = lax.reduce_window(x, -jnp.inf, lax.max, (1, 1, 2, 2), (1, 1, 2, 2),
                          "VALID")

    def conv(a, w):
        return lax.conv_general_dilated(
            a.astype(conv_dtype), w.astype(conv_dtype),
            window_strides=(1, 1), padding=((1, 1), (1, 1)),
            dimension_numbers=("NCHW", "OIHW", "NCHW"),
            preferred_element_type=jnp.float32)

    def inorm(a, g, bb):
        m = jnp.mean(a, axis=(2, 3), keepdims=True)
        v = jnp.mean((a - m) ** 2, axis=(2, 3), keepdims=True)
        return (a - m) / jnp.sqrt(v + EPS) * g[None, :, None, None] \
            + bb[None, :, None, None]

    h = jax.nn.relu(inorm(conv(p, w1), g1, b1))
    h = jax.nn.relu(inorm(conv(h, w2), g2, b2))
    return h


if __name__ == "__main__":
    N, C_in, C_out, H, W = 2, 4, 8, 16, 16
    key = jax.random.PRNGKey(0)
    k1, k2, k3, k4, k5, k6, k7 = jax.random.split(key, 7)

    x = jax.random.normal(k1, (N, C_in, H, W), jnp.float32)
    # Conv weights (OIHW, bias=False); InstanceNorm affine params.
    w1 = 0.1 * jax.random.normal(k2, (C_out, C_in, 3, 3), jnp.float32)
    w2 = 0.1 * jax.random.normal(k3, (C_out, C_out, 3, 3), jnp.float32)
    g1 = 1.0 + 0.1 * jax.random.normal(k4, (C_out,), jnp.float32)
    b1 = 0.1 * jax.random.normal(k5, (C_out,), jnp.float32)
    g2 = 1.0 + 0.1 * jax.random.normal(k6, (C_out,), jnp.float32)
    b2 = 0.1 * jax.random.normal(k7, (C_out,), jnp.float32)

    down_jit = jax.jit(down_pallas)
    out = jax.block_until_ready(down_jit(x, w1, g1, b1, w2, g2, b2))
    assert out.shape == (N, C_out, H // 2, W // 2), out.shape

    # Precision-matched reference (bf16 conv operands, f32 accumulation/norm):
    # validates every structural detail (pool, taps, masks, weight packing,
    # norm) tightly.
    ref_mm = down_reference(x, w1, g1, b1, w2, g2, b2, conv_dtype=MM_DTYPE)
    err_mm = float(jnp.max(jnp.abs(out - ref_mm)))
    assert jnp.allclose(out, ref_mm, atol=1e-2, rtol=1e-2), err_mm

    # Full-f32 module semantics: bf16 MXU operands cost O(1e-2) absolute.
    ref_f32 = down_reference(x, w1, g1, b1, w2, g2, b2, conv_dtype=jnp.float32)
    err_f32 = float(jnp.max(jnp.abs(out - ref_f32)))
    assert jnp.allclose(out, ref_f32, atol=1e-1, rtol=1e-1), err_f32

    print("KERNEL_OK")
</pallas_src>

<mosaic_0001>
module attributes {stable_mosaic.version = 11 : i64} {
  func.func @kernel(%arg0: i32, %arg1: memref<1x16x64xbf16, #tpu.memory_space<vmem>>, %arg2: memref<3x16x48xbf16, #tpu.memory_space<vmem>>, %arg3: memref<16x1xf32, #tpu.memory_space<vmem>>, %arg4: memref<16x1xf32, #tpu.memory_space<vmem>>, %arg5: memref<3x8x48xbf16, #tpu.memory_space<vmem>>, %arg6: memref<8x1xf32, #tpu.memory_space<vmem>>, %arg7: memref<8x1xf32, #tpu.memory_space<vmem>>, %arg8: memref<2x64xbf16, #tpu.memory_space<vmem>>, %arg9: memref<1x8x64xf32, #tpu.memory_space<vmem>>, %arg10: memref<48x320xbf16, #tpu.memory_space<vmem>>, %arg11: memref<48x320xbf16, #tpu.memory_space<vmem>>) attributes {dimension_semantics = [#tpu.dimension_semantics<parallel>], iteration_bounds = array<i64: 2>, scalar_prefetch = 0 : i64, scratch_operands = 2 : i64, tpu.core_type = #tpu.core_type<tc>, window_params = [{transform_indices = @transform_0, window_bounds = array<i64: 1, 16, 64>}, {pipeline_mode = #tpu.pipeline_mode<synchronous>, transform_indices = @transform_1, window_bounds = array<i64: 3, 16, 48>}, {pipeline_mode = #tpu.pipeline_mode<synchronous>, transform_indices = @transform_2, window_bounds = array<i64: 16, 1>}, {pipeline_mode = #tpu.pipeline_mode<synchronous>, transform_indices = @transform_3, window_bounds = array<i64: 16, 1>}, {pipeline_mode = #tpu.pipeline_mode<synchronous>, transform_indices = @transform_4, window_bounds = array<i64: 3, 8, 48>}, {pipeline_mode = #tpu.pipeline_mode<synchronous>, transform_indices = @transform_5, window_bounds = array<i64: 8, 1>}, {pipeline_mode = #tpu.pipeline_mode<synchronous>, transform_indices = @transform_6, window_bounds = array<i64: 8, 1>}, {pipeline_mode = #tpu.pipeline_mode<synchronous>, transform_indices = @transform_7, window_bounds = array<i64: 2, 64>}, {transform_indices = @transform_8, window_bounds = array<i64: 1, 8, 64>}]} {
    %c0 = arith.constant 0 : index
    %c0_0 = arith.constant 0 : index
    %0 = vector.load %arg8[%c0, %c0_0] : memref<2x64xbf16, #tpu.memory_space<vmem>>, vector<1x64xbf16>
    %c1 = arith.constant 1 : index
    %c0_1 = arith.constant 0 : index
    %1 = vector.load %arg8[%c1, %c0_1] : memref<2x64xbf16, #tpu.memory_space<vmem>>, vector<1x64xbf16>
    %c0_2 = arith.constant 0 : index
    %c0_3 = arith.constant 0 : index
    %c0_4 = arith.constant 0 : index
    %2 = vector.load %arg1[%c0_2, %c0_3, %c0_4] : memref<1x16x64xbf16, #tpu.memory_space<vmem>>, vector<1x16x64xbf16>
    %3 = vector.shape_cast %2 : vector<1x16x64xbf16> to vector<16x64xbf16>
    %cst = arith.constant 0.000000e+00 : bf16
    %4 = vector.broadcast %cst : bf16 to vector<48x8xbf16>
    %c0_5 = arith.constant 0 : index
    %c120 = arith.constant 120 : index
    %5 = vector.load %arg10[%c0_5, %c120] : memref<48x320xbf16, #tpu.memory_space<vmem>>, vector<48x8xbf16>
    tpu.vector_store %arg10[%c0_5, %c120], %4 {strides = array<i32>} : memref<48x320xbf16, #tpu.memory_space<vmem>>, vector<48x8xbf16>,
    %c0_6 = arith.constant 0 : index
    %c192 = arith.constant 192 : index
    %6 = vector.load %arg10[%c0_6, %c192] : memref<48x320xbf16, #tpu.memory_space<vmem>>, vector<48x8xbf16>
    tpu.vector_store %arg10[%c0_6, %c192], %4 {strides = array<i32>} : memref<48x320xbf16, #tpu.memory_space<vmem>>, vector<48x8xbf16>,
    %c16 = arith.constant 16 : index
    %c128 = arith.constant 128 : index
    %7 = vector.load %arg10[%c16, %c128] : memref<48x320xbf16, #tpu.memory_space<vmem>>, vector<16x64xbf16>
    tpu.vector_store %arg10[%c16, %c128], %3 {strides = array<i32>} : memref<48x320xbf16, #tpu.memory_space<vmem>>, vector<16x64xbf16>,
    %c16_7 = arith.constant 16 : index
    %c127 = arith.constant 127 : index
    %8 = vector.load %arg10[%c16_7, %c127] : memref<48x320xbf16, #tpu.memory_space<vmem>>, vector<16x64xbf16>
    %9 = vector.broadcast %0 : vector<1x64xbf16> to vector<16x64xbf16>
    %10 = arith.mulf %8, %9 : vector<16x64xbf16>
    %c0_8 = arith.constant 0 : index
    %c128_9 = arith.constant 128 : index
    %11 = vector.load %arg10[%c0_8, %c128_9] : memref<48x320xbf16, #tpu.memory_space<vmem>>, vector<16x64xbf16>
    tpu.vector_store %arg10[%c0_8, %c128_9], %10 {strides = array<i32>} : memref<48x320xbf16, #tpu.memory_space<vmem>>, vector<16x64xbf16>,
    %c16_10 = arith.constant 16 : index
    %c129 = arith.constant 129 : index
    %12 = vector.load %arg10[%c16_10, %c129] : memref<48x320xbf16, #tpu.memory_space<vmem>>, vector<16x64xbf16>
    %13 = vector.broadcast %1 : vector<1x64xbf16> to vector<16x64xbf16>
    %14 = arith.mulf %12, %13 : vector<16x64xbf16>
    %c32 = arith.constant 32 : index
    %c128_11 = arith.constant 128 : index
    %15 = vector.load %arg10[%c32, %c128_11] : memref<48x320xbf16, #tpu.memory_space<vmem>>, vector<16x64xbf16>
    tpu.vector_store %arg10[%c32, %c128_11], %14 {strides = array<i32>} : memref<48x320xbf16, #tpu.memory_space<vmem>>, vector<16x64xbf16>,
    %c0_12 = arith.constant 0 : index
    %c0_13 = arith.constant 0 : index
    %c0_14 = arith.constant 0 : index
    %16 = vector.load %arg2[%c0_12, %c0_13, %c0_14] : memref<3x16x48xbf16, #tpu.memory_space<vmem>>, vector<1x16x48xbf16>
    %17 = vector.shape_cast %16 : vector<1x16x48xbf16> to vector<16x48xbf16>
    %c0_15 = arith.constant 0 : index
    %c120_16 = arith.constant 120 : index
    %18 = vector.load %arg10[%c0_15, %c120_16] : memref<48x320xbf16, #tpu.memory_space<vmem>>, vector<48x64xbf16>
    %cst_17 = arith.constant dense<0.000000e+00> : vector<16x64xf32>
    %19 = tpu.matmul %17, %18, %cst_17 {dimension_numbers = #tpu.dot_dimension_numbers<[1], [0], [0], [1], [0, 0, 1, 1], [], []>} : vector<16x48xbf16>, vector<48x64xbf16>, vector<16x64xf32> -> vector<16x64xf32>
    %c1_18 = arith.constant 1 : index
    %c0_19 = arith.constant 0 : index
    %c0_20 = arith.constant 0 : index
    %20 = vector.load %arg2[%c1_18, %c0_19, %c0_20] : memref<3x16x48xbf16, #tpu.memory_space<vmem>>, vector<1x16x48xbf16>
    %21 = vector.shape_cast %20 : vector<1x16x48xbf16> to vector<16x48xbf16>
    %c0_21 = arith.constant 0 : index
    %c128_22 = arith.constant 128 : index
    %22 = vector.load %arg10[%c0_21, %c128_22] : memref<48x320xbf16, #tpu.memory_space<vmem>>, vector<48x64xbf16>
    %cst_23 = arith.constant dense<0.000000e+00> : vector<16x64xf32>
    %23 = tpu.matmul %21, %22, %cst_23 {dimension_numbers = #tpu.dot_dimension_numbers<[1], [0], [0], [1], [0, 0, 1, 1], [], []>} : vector<16x48xbf16>, vector<48x64xbf16>, vector<16x64xf32> -> vector<16x64xf32>
    %24 = arith.addf %19, %23 : vector<16x64xf32>
    %c2 = arith.constant 2 : index
    %c0_24 = arith.constant 0 : index
    %c0_25 = arith.constant 0 : index
    %25 = vector.load %arg2[%c2, %c0_24, %c0_25] : memref<3x16x48xbf16, #tpu.memory_space<vmem>>, vector<1x16x48xbf16>
    %26 = vector.shape_cast %25 : vector<1x16x48xbf16> to vector<16x48xbf16>
    %c0_26 = arith.constant 0 : index
    %c136 = arith.constant 136 : index
    %27 = vector.load %arg10[%c0_26, %c136] : memref<48x320xbf16, #tpu.memory_space<vmem>>, vector<48x64xbf16>
    %cst_27 = arith.constant dense<0.000000e+00> : vector<16x64xf32>
    %28 = tpu.matmul %26, %27, %cst_27 {dimension_numbers = #tpu.dot_dimension_numbers<[1], [0], [0], [1], [0, 0, 1, 1], [], []>} : vector<16x48xbf16>, vector<48x64xbf16>, vector<16x64xf32> -> vector<16x64xf32>
    %29 = arith.addf %24, %28 : vector<16x64xf32>
    %c0_28 = arith.constant 0 : index
    %c0_29 = arith.constant 0 : index
    %30 = vector.load %arg3[%c0_28, %c0_29] : memref<16x1xf32, #tpu.memory_space<vmem>>, vector<16x1xf32>
    %c0_30 = arith.constant 0 : index
    %c0_31 = arith.constant 0 : index
    %31 = vector.load %arg4[%c0_30, %c0_31] : memref<16x1xf32, #tpu.memory_space<vmem>>, vector<16x1xf32>
    %cst_32 = arith.constant dense<0.000000e+00> : vector<16xf32>
    %32 = vector.multi_reduction <add>, %29, %cst_32 [1] : vector<16x64xf32> to vector<16xf32>
    %33 = vector.shape_cast %32 : vector<16xf32> to vector<16x1xf32>
    %cst_33 = arith.constant 1.562500e-02 : f32
    %34 = vector.broadcast %cst_33 : f32 to vector<16x1xf32>
    %35 = arith.mulf %33, %34 : vector<16x1xf32>
    %36 = vector.broadcast %35 : vector<16x1xf32> to vector<16x64xf32>
    %37 = arith.subf %29, %36 : vector<16x64xf32>
    %38 = arith.mulf %37, %37 : vector<16x64xf32>
    %cst_34 = arith.constant dense<0.000000e+00> : vector<16xf32>
    %39 = vector.multi_reduction <add>, %38, %cst_34 [1] : vector<16x64xf32> to vector<16xf32>
    %40 = vector.shape_cast %39 : vector<16xf32> to vector<16x1xf32>
    %cst_35 = arith.constant 1.562500e-02 : f32
    %41 = vector.broadcast %cst_35 : f32 to vector<16x1xf32>
    %42 = arith.mulf %40, %41 : vector<16x1xf32>
    %cst_36 = arith.constant 9.99999974E-6 : f32
    %43 = vector.broadcast %cst_36 : f32 to vector<16x1xf32>
    %44 = arith.addf %42, %43 : vector<16x1xf32>
    %45 = math.rsqrt %44 : vector<16x1xf32>
    %46 = vector.broadcast %45 : vector<16x1xf32> to vector<16x64xf32>
    %47 = arith.mulf %37, %46 : vector<16x64xf32>
    %48 = vector.broadcast %30 : vector<16x1xf32> to vector<16x64xf32>
    %49 = arith.mulf %47, %48 : vector<16x64xf32>
    %50 = vector.broadcast %31 : vector<16x1xf32> to vector<16x64xf32>
    %51 = arith.addf %49, %50 : vector<16x64xf32>
    %cst_37 = arith.constant 0.000000e+00 : f32
    %52 = vector.broadcast %cst_37 : f32 to vector<16x64xf32>
    %53 = arith.maximumf %51, %52 : vector<16x64xf32>
    %54 = arith.truncf %53 : vector<16x64xf32> to vector<16x64xbf16>
    %cst_38 = arith.constant 0.000000e+00 : bf16
    %55 = vector.broadcast %cst_38 : bf16 to vector<48x8xbf16>
    %c0_39 = arith.constant 0 : index
    %c120_40 = arith.constant 120 : index
    %56 = vector.load %arg11[%c0_39, %c120_40] : memref<48x320xbf16, #tpu.memory_space<vmem>>, vector<48x8xbf16>
    tpu.vector_store %arg11[%c0_39, %c120_40], %55 {strides = array<i32>} : memref<48x320xbf16, #tpu.memory_space<vmem>>, vector<48x8xbf16>,
    %c0_41 = arith.constant 0 : index
    %c192_42 = arith.constant 192 : index
    %57 = vector.load %arg11[%c0_41, %c192_42] : memref<48x320xbf16, #tpu.memory_space<vmem>>, vector<48x8xbf16>
    tpu.vector_store %arg11[%c0_41, %c192_42], %55 {strides = array<i32>} : memref<48x320xbf16, #tpu.memory_space<vmem>>, vector<48x8xbf16>,
    %c16_43 = arith.constant 16 : index
    %c128_44 = arith.constant 128 : index
    %58 = vector.load %arg11[%c16_43, %c128_44] : memref<48x320xbf16, #tpu.memory_space<vmem>>, vector<16x64xbf16>
    tpu.vector_store %arg11[%c16_43, %c128_44], %54 {strides = array<i32>} : memref<48x320xbf16, #tpu.memory_space<vmem>>, vector<16x64xbf16>,
    %c16_45 = arith.constant 16 : index
    %c127_46 = arith.constant 127 : index
    %59 = vector.load %arg11[%c16_45, %c127_46] : memref<48x320xbf16, #tpu.memory_space<vmem>>, vector<16x64xbf16>
    %60 = vector.broadcast %0 : vector<1x64xbf16> to vector<16x64xbf16>
    %61 = arith.mulf %59, %60 : vector<16x64xbf16>
    %c0_47 = arith.constant 0 : index
    %c128_48 = arith.constant 128 : index
    %62 = vector.load %arg11[%c0_47, %c128_48] : memref<48x320xbf16, #tpu.memory_space<vmem>>, vector<16x64xbf16>
    tpu.vector_store %arg11[%c0_47, %c128_48], %61 {strides = array<i32>} : memref<48x320xbf16, #tpu.memory_space<vmem>>, vector<16x64xbf16>,
    %c16_49 = arith.constant 16 : index
    %c129_50 = arith.constant 129 : index
    %63 = vector.load %arg11[%c16_49, %c129_50] : memref<48x320xbf16, #tpu.memory_space<vmem>>, vector<16x64xbf16>
    %64 = vector.broadcast %1 : vector<1x64xbf16> to vector<16x64xbf16>
    %65 = arith.mulf %63, %64 : vector<16x64xbf16>
    %c32_51 = arith.constant 32 : index
    %c128_52 = arith.constant 128 : index
    %66 = vector.load %arg11[%c32_51, %c128_52] : memref<48x320xbf16, #tpu.memory_space<vmem>>, vector<16x64xbf16>
    tpu.vector_store %arg11[%c32_51, %c128_52], %65 {strides = array<i32>} : memref<48x320xbf16, #tpu.memory_space<vmem>>, vector<16x64xbf16>,
    %c0_53 = arith.constant 0 : index
    %c0_54 = arith.constant 0 : index
    %c0_55 = arith.constant 0 : index
    %67 = vector.load %arg5[%c0_53, %c0_54, %c0_55] : memref<3x8x48xbf16, #tpu.memory_space<vmem>>, vector<1x8x48xbf16>
    %68 = vector.shape_cast %67 : vector<1x8x48xbf16> to vector<8x48xbf16>
    %c0_56 = arith.constant 0 : index
    %c120_57 = arith.constant 120 : index
    %69 = vector.load %arg11[%c0_56, %c120_57] : memref<48x320xbf16, #tpu.memory_space<vmem>>, vector<48x64xbf16>
    %cst_58 = arith.constant dense<0.000000e+00> : vector<8x64xf32>
    %70 = tpu.matmul %68, %69, %cst_58 {dimension_numbers = #tpu.dot_dimension_numbers<[1], [0], [0], [1], [0, 0, 1, 1], [], []>} : vector<8x48xbf16>, vector<48x64xbf16>, vector<8x64xf32> -> vector<8x64xf32>
    %c1_59 = arith.constant 1 : index
    %c0_60 = arith.constant 0 : index
    %c0_61 = arith.constant 0 : index
    %71 = vector.load %arg5[%c1_59, %c0_60, %c0_61] : memref<3x8x48xbf16, #tpu.memory_space<vmem>>, vector<1x8x48xbf16>
    %72 = vector.shape_cast %71 : vector<1x8x48xbf16> to vector<8x48xbf16>
    %c0_62 = arith.constant 0 : index
    %c128_63 = arith.constant 128 : index
    %73 = vector.load %arg11[%c0_62, %c128_63] : memref<48x320xbf16, #tpu.memory_space<vmem>>, vector<48x64xbf16>
    %cst_64 = arith.constant dense<0.000000e+00> : vector<8x64xf32>
    %74 = tpu.matmul %72, %73, %cst_64 {dimension_numbers = #tpu.dot_dimension_numbers<[1], [0], [0], [1], [0, 0, 1, 1], [], []>} : vector<8x48xbf16>, vector<48x64xbf16>, vector<8x64xf32> -> vector<8x64xf32>
    %75 = arith.addf %70, %74 : vector<8x64xf32>
    %c2_65 = arith.constant 2 : index
    %c0_66 = arith.constant 0 : index
    %c0_67 = arith.constant 0 : index
    %76 = vector.load %arg5[%c2_65, %c0_66, %c0_67] : memref<3x8x48xbf16, #tpu.memory_space<vmem>>, vector<1x8x48xbf16>
    %77 = vector.shape_cast %76 : vector<1x8x48xbf16> to vector<8x48xbf16>
    %c0_68 = arith.constant 0 : index
    %c136_69 = arith.constant 136 : index
    %78 = vector.load %arg11[%c0_68, %c136_69] : memref<48x320xbf16, #tpu.memory_space<vmem>>, vector<48x64xbf16>
    %cst_70 = arith.constant dense<0.000000e+00> : vector<8x64xf32>
    %79 = tpu.matmul %77, %78, %cst_70 {dimension_numbers = #tpu.dot_dimension_numbers<[1], [0], [0], [1], [0, 0, 1, 1], [], []>} : vector<8x48xbf16>, vector<48x64xbf16>, vector<8x64xf32> -> vector<8x64xf32>
    %80 = arith.addf %75, %79 : vector<8x64xf32>
    %c0_71 = arith.constant 0 : index
    %c0_72 = arith.constant 0 : index
    %81 = vector.load %arg6[%c0_71, %c0_72] : memref<8x1xf32, #tpu.memory_space<vmem>>, vector<8x1xf32>
    %c0_73 = arith.constant 0 : index
    %c0_74 = arith.constant 0 : index
    %82 = vector.load %arg7[%c0_73, %c0_74] : memref<8x1xf32, #tpu.memory_space<vmem>>, vector<8x1xf32>
    %cst_75 = arith.constant dense<0.000000e+00> : vector<8xf32>
    %83 = vector.multi_reduction <add>, %80, %cst_75 [1] : vector<8x64xf32> to vector<8xf32>
    %84 = vector.shape_cast %83 : vector<8xf32> to vector<8x1xf32>
    %cst_76 = arith.constant 1.562500e-02 : f32
    %85 = vector.broadcast %cst_76 : f32 to vector<8x1xf32>
    %86 = arith.mulf %84, %85 : vector<8x1xf32>
    %87 = vector.broadcast %86 : vector<8x1xf32> to vector<8x64xf32>
    %88 = arith.subf %80, %87 : vector<8x64xf32>
    %89 = arith.mulf %88, %88 : vector<8x64xf32>
    %cst_77 = arith.constant dense<0.000000e+00> : vector<8xf32>
    %90 = vector.multi_reduction <add>, %89, %cst_77 [1] : vector<8x64xf32> to vector<8xf32>
    %91 = vector.shape_cast %90 : vector<8xf32> to vector<8x1xf32>
    %cst_78 = arith.constant 1.562500e-02 : f32
    %92 = vector.broadcast %cst_78 : f32 to vector<8x1xf32>
    %93 = arith.mulf %91, %92 : vector<8x1xf32>
    %cst_79 = arith.constant 9.99999974E-6 : f32
    %94 = vector.broadcast %cst_79 : f32 to vector<8x1xf32>
    %95 = arith.addf %93, %94 : vector<8x1xf32>
    %96 = math.rsqrt %95 : vector<8x1xf32>
    %97 = vector.broadcast %96 : vector<8x1xf32> to vector<8x64xf32>
    %98 = arith.mulf %88, %97 : vector<8x64xf32>
    %99 = vector.broadcast %81 : vector<8x1xf32> to vector<8x64xf32>
    %100 = arith.mulf %98, %99 : vector<8x64xf32>
    %101 = vector.broadcast %82 : vector<8x1xf32> to vector<8x64xf32>
    %102 = arith.addf %100, %101 : vector<8x64xf32>
    %cst_80 = arith.constant 0.000000e+00 : f32
    %103 = vector.broadcast %cst_80 : f32 to vector<8x64xf32>
    %104 = arith.maximumf %102, %103 : vector<8x64xf32>
    %c0_81 = arith.constant 0 : index
    %c0_82 = arith.constant 0 : index
    %c0_83 = arith.constant 0 : index
    %105 = vector.load %arg9[%c0_81, %c0_82, %c0_83] : memref<1x8x64xf32, #tpu.memory_space<vmem>>, vector<1x8x64xf32>
    %106 = vector.shape_cast %105 : vector<1x8x64xf32> to vector<8x64xf32>
    %107 = vector.shape_cast %104 : vector<8x64xf32> to vector<1x8x64xf32>
    tpu.vector_store %arg9[%c0_81, %c0_82, %c0_83], %107 {strides = array<i32>} : memref<1x8x64xf32, #tpu.memory_space<vmem>>, vector<1x8x64xf32>,
    return
  }
  func.func @transform_0(%arg0: i32) -> (i32, i32, i32) {
    %c0_i32 = arith.constant 0 : i32
    %c0_i32_0 = arith.constant 0 : i32
    %c0_i32_1 = arith.constant 0 : i32
    return %arg0, %c0_i32, %c0_i32_0 : i32, i32, i32
  }
  func.func @transform_1(%arg0: i32) -> (i32, i32, i32) {
    %c0_i32 = arith.constant 0 : i32
    %c0_i32_0 = arith.constant 0 : i32
    %c0_i32_1 = arith.constant 0 : i32
    %c0_i32_2 = arith.constant 0 : i32
    return %c0_i32, %c0_i32_0, %c0_i32_1 : i32, i32, i32
  }
  func.func @transform_2(%arg0: i32) -> (i32, i32) {
    %c0_i32 = arith.constant 0 : i32
    %c0_i32_0 = arith.constant 0 : i32
    %c0_i32_1 = arith.constant 0 : i32
    return %c0_i32, %c0_i32_0 : i32, i32
  }
  func.func @transform_3(%arg0: i32) -> (i32, i32) {
    %c0_i32 = arith.constant 0 : i32
    %c0_i32_0 = arith.constant 0 : i32
    %c0_i32_1 = arith.constant 0 : i32
    return %c0_i32, %c0_i32_0 : i32, i32
  }
  func.func @transform_4(%arg0: i32) -> (i32, i32, i32) {
    %c0_i32 = arith.constant 0 : i32
    %c0_i32_0 = arith.constant 0 : i32
    %c0_i32_1 = arith.constant 0 : i32
    %c0_i32_2 = arith.constant 0 : i32
    return %c0_i32, %c0_i32_0, %c0_i32_1 : i32, i32, i32
  }
  func.func @transform_5(%arg0: i32) -> (i32, i32) {
    %c0_i32 = arith.constant 0 : i32
    %c0_i32_0 = arith.constant 0 : i32
    %c0_i32_1 = arith.constant 0 : i32
    return %c0_i32, %c0_i32_0 : i32, i32
  }
  func.func @transform_6(%arg0: i32) -> (i32, i32) {
    %c0_i32 = arith.constant 0 : i32
    %c0_i32_0 = arith.constant 0 : i32
    %c0_i32_1 = arith.constant 0 : i32
    return %c0_i32, %c0_i32_0 : i32, i32
  }
  func.func @transform_7(%arg0: i32) -> (i32, i32) {
    %c0_i32 = arith.constant 0 : i32
    %c0_i32_0 = arith.constant 0 : i32
    %c0_i32_1 = arith.constant 0 : i32
    return %c0_i32, %c0_i32_0 : i32, i32
  }
  func.func @transform_8(%arg0: i32) -> (i32, i32, i32) {
    %c0_i32 = arith.constant 0 : i32
    %c0_i32_0 = arith.constant 0 : i32
    %c0_i32_1 = arith.constant 0 : i32
    return %arg0, %c0_i32, %c0_i32_0 : i32, i32, i32
  }
}

</mosaic_0001>

<llo_original>
// kernel: down_pallas.1
$region0: #{down_pallas.1}
  #allocation0 [shape = 'u32[]', space=smem, size = 0x4, offset = 0x4, fixed_abs, tag = 'smem constant byte address 0x4 - core index']
  #allocation1 [shape = 'u32[72,128]{1,0:T(1,128)}', space=vmem, size = 0x9000, scoped, tag = 'internal scratch']
  #allocation2 [shape = 'bf16[48,320]{1,0:T(8,128)(2,1)}', space=vmem, size = 0x9000, scoped, tag = 'scratch operand']
  #allocation3 [shape = 'bf16[48,320]{1,0:T(8,128)(2,1)}', space=vmem, size = 0x9000, scoped, tag = 'scratch operand']
  %s0 = inlined_call_operand.vmem [shape: bf16[2,16,64], index: 0, kind: input, shape index: {}]
  %s1 = inlined_call_operand.vmem [shape: bf16[3,16,48], index: 1, kind: input, shape index: {}]
  %s2 = inlined_call_operand.vmem [shape: f32[16,1], index: 2, kind: input, shape index: {}]
  %s3 = inlined_call_operand.vmem [shape: f32[16,1], index: 3, kind: input, shape index: {}]
  %s4 = inlined_call_operand.vmem [shape: bf16[3,8,48], index: 4, kind: input, shape index: {}]
  %s5 = inlined_call_operand.vmem [shape: f32[8,1], index: 5, kind: input, shape index: {}]
  %s6 = inlined_call_operand.vmem [shape: f32[8,1], index: 6, kind: input, shape index: {}]
  %s7 = inlined_call_operand.vmem [shape: bf16[2,64], index: 7, kind: input, shape index: {}]
  %s8 = inlined_call_operand.vmem [shape: f32[2,8,64], index: 8, kind: output, shape index: {}]
  %s9 = sld [smem:[#allocation0]]
  $region65: #{down_pallas.1} parent=0
    _
  %s11 = ssub.s32 1, %s9
  %s12 = scalar_select 0, %s11, %s9
  loop: start=0, step=1, limit=4
  $region2: #{down_pallas.1} parent=0 // loop_pre_header
    _
  $region3: #{down_pallas.1} parent=0 // loop_header
    %s14 = sphi 0, %s18
    %p15 = scmp.ge.s32.totalorder %s14, 4
    %s24 = sphi 0, %s26
    %s27 = sphi 0, %s24
    %s28 = sphi 0, %s27
    %s44 = sphi 0, %s28
    %s48 = sphi 0, %s48
    %s50 = sphi 0, %s48
    %s51 = sphi 0, %s50
    %s65 = sphi 0, %s51
    %s69 = sphi 0, %s69
    %s71 = sphi 0, %s69
    %s72 = sphi 0, %s71
    %s86 = sphi 0, %s72
    %s90 = sphi 0, %s90
    %s92 = sphi 0, %s90
    %s93 = sphi 0, %s92
    %s107 = sphi 0, %s93
    %s111 = sphi 0, %s111
    %s113 = sphi 0, %s111
    %s114 = sphi 0, %s113
    %s128 = sphi 0, %s114
    %s132 = sphi 0, %s132
    %s134 = sphi 0, %s132
    %s135 = sphi 0, %s134
    %s149 = sphi 0, %s135
    %s153 = sphi 0, %s153
    %s155 = sphi 0, %s153
    %s156 = sphi 0, %s155
    %s170 = sphi 0, %s156
    %s174 = sphi 0, %s174
    %s176 = sphi 0, %s174
    %s177 = sphi 0, %s176
    %s191 = sphi 0, %s177
    %s197 = sphi 0, %s199
    %s200 = sphi 0, %s197
    %s201 = sphi 0, %s200
    %s217 = sphi 0, %s201
  $region4: #{down_pallas.1} parent=0 // loop_header_branch
    %17 = sbr.rel (%p15) target = $region8
  $region5: #{down_pallas.1} parent=0 // loop_body
    %s19 = ssub.s32 %s14, 1
    %s20 = ssub.s32 %s14, 2
    %s21 = sadd.s32 %s14, 1
    %s22 = ssub.s32 %s14, %s21
    %p23 = scmp.eq.s32.totalorder %s22, 0
    %s25 = sadd.s32 %s24, 1
    %s26 = scalar_select %p23, %s24, %s25
    %p29 = pneg %p23
    %p30 = scmp.eq.s32.totalorder %s14, 1
    %p31 = por %p29, %p30
    %p32 = scmp.ne.s32.totalorder %s24, %s27
    %p33 = scmp.eq.s32.totalorder %s14, 0
    %p34 = por %p32, %p33
    %p35 = scmp.ne.s32.totalorder %s24, %s27
    %p36 = scmp.eq.s32.totalorder %s19, 1
    %p37 = por %p35, %p36
    %p38 = scmp.ne.s32.totalorder %s27, %s28
    %p39 = scmp.eq.s32.totalorder %s19, 0
    %p40 = por %p38, %p39
    %p41 = scmp.ne.s32.totalorder %s27, %s28
    %p42 = scmp.eq.s32.totalorder %s20, 1
    %p43 = por %p41, %p42
    %p45 = scmp.ne.s32.totalorder %s28, %s44
    %p46 = scmp.eq.s32.totalorder %s20, 0
    %p47 = por %p45, %p46
    %s49 = sadd.s32 %s48, 1
    %p52 = scmp.eq.s32.totalorder %s14, 1
    %p53 = scmp.ne.s32.totalorder %s48, %s50
    %p54 = scmp.eq.s32.totalorder %s14, 0
    %p55 = por %p53, %p54
    %p56 = scmp.ne.s32.totalorder %s48, %s50
    %p57 = scmp.eq.s32.totalorder %s19, 1
    %p58 = por %p56, %p57
    %p59 = scmp.ne.s32.totalorder %s50, %s51
    %p60 = scmp.eq.s32.totalorder %s19, 0
    %p61 = por %p59, %p60
    %p62 = scmp.ne.s32.totalorder %s50, %s51
    %p63 = scmp.eq.s32.totalorder %s20, 1
    %p64 = por %p62, %p63
    %p66 = scmp.ne.s32.totalorder %s51, %s65
    %p67 = scmp.eq.s32.totalorder %s20, 0
    %p68 = por %p66, %p67
    %s70 = sadd.s32 %s69, 1
    %p73 = scmp.eq.s32.totalorder %s14, 1
    %p74 = scmp.ne.s32.totalorder %s69, %s71
    %p75 = scmp.eq.s32.totalorder %s14, 0
    %p76 = por %p74, %p75
    %p77 = scmp.ne.s32.totalorder %s69, %s71
    %p78 = scmp.eq.s32.totalorder %s19, 1
    %p79 = por %p77, %p78
    %p80 = scmp.ne.s32.totalorder %s71, %s72
    %p81 = scmp.eq.s32.totalorder %s19, 0
    %p82 = por %p80, %p81
    %p83 = scmp.ne.s32.totalorder %s71, %s72
    %p84 = scmp.eq.s32.totalorder %s20, 1
    %p85 = por %p83, %p84
    %p87 = scmp.ne.s32.totalorder %s72, %s86
    %p88 = scmp.eq.s32.totalorder %s20, 0
    %p89 = por %p87, %p88
    %s91 = sadd.s32 %s90, 1
    %p94 = scmp.eq.s32.totalorder %s14, 1
    %p95 = scmp.ne.s32.totalorder %s90, %s92
    %p96 = scmp.eq.s32.totalorder %s14, 0
    %p97 = por %p95, %p96
    %p98 = scmp.ne.s32.totalorder %s90, %s92
    %p99 = scmp.eq.s32.totalorder %s19, 1
    %p100 = por %p98, %p99
    %p101 = scmp.ne.s32.totalorder %s92, %s93
    %p102 = scmp.eq.s32.totalorder %s19, 0
    %p103 = por %p101, %p102
    %p104 = scmp.ne.s32.totalorder %s92, %s93
    %p105 = scmp.eq.s32.totalorder %s20, 1
    %p106 = por %p104, %p105
    %p108 = scmp.ne.s32.totalorder %s93, %s107
    %p109 = scmp.eq.s32.totalorder %s20, 0
    %p110 = por %p108, %p109
    %s112 = sadd.s32 %s111, 1
    %p115 = scmp.eq.s32.totalorder %s14, 1
    %p116 = scmp.ne.s32.totalorder %s111, %s113
    %p117 = scmp.eq.s32.totalorder %s14, 0
    %p118 = por %p116, %p117
    %p119 = scmp.ne.s32.totalorder %s111, %s113
    %p120 = scmp.eq.s32.totalorder %s19, 1
    %p121 = por %p119, %p120
    %p122 = scmp.ne.s32.totalorder %s113, %s114
    %p123 = scmp.eq.s32.totalorder %s19, 0
    %p124 = por %p122, %p123
    %p125 = scmp.ne.s32.totalorder %s113, %s114
    %p126 = scmp.eq.s32.totalorder %s20, 1
    %p127 = por %p125, %p126
    %p129 = scmp.ne.s32.totalorder %s114, %s128
    %p130 = scmp.eq.s32.totalorder %s20, 0
    %p131 = por %p129, %p130
    %s133 = sadd.s32 %s132, 1
    %p136 = scmp.eq.s32.totalorder %s14, 1
    %p137 = scmp.ne.s32.totalorder %s132, %s134
    %p138 = scmp.eq.s32.totalorder %s14, 0
    %p139 = por %p137, %p138
    %p140 = scmp.ne.s32.totalorder %s132, %s134
    %p141 = scmp.eq.s32.totalorder %s19, 1
    %p142 = por %p140, %p141
    %p143 = scmp.ne.s32.totalorder %s134, %s135
    %p144 = scmp.eq.s32.totalorder %s19, 0
    %p145 = por %p143, %p144
    %p146 = scmp.ne.s32.totalorder %s134, %s135
    %p147 = scmp.eq.s32.totalorder %s20, 1
    %p148 = por %p146, %p147
    %p150 = scmp.ne.s32.totalorder %s135, %s149
    %p151 = scmp.eq.s32.totalorder %s20, 0
    %p152 = por %p150, %p151
    %s154 = sadd.s32 %s153, 1
    %p157 = scmp.eq.s32.totalorder %s14, 1
    %p158 = scmp.ne.s32.totalorder %s153, %s155
    %p159 = scmp.eq.s32.totalorder %s14, 0
    %p160 = por %p158, %p159
    %p161 = scmp.ne.s32.totalorder %s153, %s155
    %p162 = scmp.eq.s32.totalorder %s19, 1
    %p163 = por %p161, %p162
    %p164 = scmp.ne.s32.totalorder %s155, %s156
    %p165 = scmp.eq.s32.totalorder %s19, 0
    %p166 = por %p164, %p165
    %p167 = scmp.ne.s32.totalorder %s155, %s156
    %p168 = scmp.eq.s32.totalorder %s20, 1
    %p169 = por %p167, %p168
    %p171 = scmp.ne.s32.totalorder %s156, %s170
    %p172 = scmp.eq.s32.totalorder %s20, 0
    %p173 = por %p171, %p172
    %s175 = sadd.s32 %s174, 1
    %p178 = scmp.eq.s32.totalorder %s14, 1
    %p179 = scmp.ne.s32.totalorder %s174, %s176
    %p180 = scmp.eq.s32.totalorder %s14, 0
    %p181 = por %p179, %p180
    %p182 = scmp.ne.s32.totalorder %s174, %s176
    %p183 = scmp.eq.s32.totalorder %s19, 1
    %p184 = por %p182, %p183
    %p185 = scmp.ne.s32.totalorder %s176, %s177
    %p186 = scmp.eq.s32.totalorder %s19, 0
    %p187 = por %p185, %p186
    %p188 = scmp.ne.s32.totalorder %s176, %s177
    %p189 = scmp.eq.s32.totalorder %s20, 1
    %p190 = por %p188, %p189
    %p192 = scmp.ne.s32.totalorder %s177, %s191
    %p193 = scmp.eq.s32.totalorder %s20, 0
    %p194 = por %p192, %p193
    %s195 = ssub.s32 %s14, %s21
    %p196 = scmp.eq.s32.totalorder %s195, 0
    %s198 = sadd.s32 %s197, 1
    %s199 = scalar_select %p196, %s197, %s198
    %p202 = pneg %p196
    %p203 = scmp.eq.s32.totalorder %s14, 1
    %p204 = por %p202, %p203
    %p205 = scmp.ne.s32.totalorder %s197, %s200
    %p206 = scmp.eq.s32.totalorder %s14, 0
    %p207 = por %p205, %p206
    %p208 = scmp.ne.s32.totalorder %s197, %s200
    %p209 = scmp.eq.s32.totalorder %s19, 1
    %p210 = por %p208, %p209
    %p211 = scmp.ne.s32.totalorder %s200, %s201
    %p212 = scmp.eq.s32.totalorder %s19, 0
    %p213 = por %p211, %p212
    %p214 = scmp.ne.s32.totalorder %s200, %s201
    %p215 = scmp.eq.s32.totalorder %s20, 1
    %p216 = por %p214, %p215
    %p218 = scmp.ne.s32.totalorder %s201, %s217
    %p219 = scmp.eq.s32.totalorder %s20, 0
    %p220 = por %p218, %p219
    %p221 = scmp.le.s32.totalorder 1, %s14
    %p222 = scmp.lt.s32.totalorder %s14, 3
    %p223 = pnand %p221, %p222
    %p224 = pneg %p223
    // Predicated region
    $region9: #{down_pallas.1} parent=5 // pred_check
      _
    $region10: #{down_pallas.1} parent=5 // pred_check_branch
      %226 = sbr.rel (%p223) target = $region12
    $region11: #{down_pallas.1} parent=5 // pred_region
      %s227 = ssub.s32 %s14, 1
      // Predicated region
      $region13: #{down_pallas.1} parent=11 // pred_check
        %p228 = pneg %p61
      $region14: #{down_pallas.1} parent=11 // pred_check_branch
        %230 = sbr.rel (%p228) target = $region16
      $region15: #{down_pallas.1} parent=11 // pred_region
        _
      $region16: #{down_pallas.1} parent=11 // pred_fallthru
        _
      // Predicated region
      $region17: #{down_pallas.1} parent=11 // pred_check
        %p231 = pneg %p82
      $region18: #{down_pallas.1} parent=11 // pred_check_branch
        %233 = sbr.rel (%p231) target = $region20
      $region19: #{down_pallas.1} parent=11 // pred_region
        _
      $region20: #{down_pallas.1} parent=11 // pred_fallthru
        _
      // Predicated region
      $region21: #{down_pallas.1} parent=11 // pred_check
        %p234 = pneg %p103
      $region22: #{down_pallas.1} parent=11 // pred_check_branch
        %236 = sbr.rel (%p234) target = $region24
      $region23: #{down_pallas.1} parent=11 // pred_region
        _
      $region24: #{down_pallas.1} parent=11 // pred_fallthru
        _
      // Predicated region
      $region25: #{down_pallas.1} parent=11 // pred_check
        %p237 = pneg %p124
      $region26: #{down_pallas.1} parent=11 // pred_check_branch
        %239 = sbr.rel (%p237) target = $region28
      $region27: #{down_pallas.1} parent=11 // pred_region
        _
      $region28: #{down_pallas.1} parent=11 // pred_fallthru
        _
      // Predicated region
      $region29: #{down_pallas.1} parent=11 // pred_check
        %p240 = pneg %p145
      $region30: #{down_pallas.1} parent=11 // pred_check_branch
        %242 = sbr.rel (%p240) target = $region32
      $region31: #{down_pallas.1} parent=11 // pred_region
        _
      $region32: #{down_pallas.1} parent=11 // pred_fallthru
        _
      // Predicated region
      $region33: #{down_pallas.1} parent=11 // pred_check
        %p243 = pneg %p166
      $region34: #{down_pallas.1} parent=11 // pred_check_branch
        %245 = sbr.rel (%p243) target = $region36
      $region35: #{down_pallas.1} parent=11 // pred_region
        _
      $region36: #{down_pallas.1} parent=11 // pred_fallthru
        _
      // Predicated region
      $region37: #{down_pallas.1} parent=11 // pred_check
        %p246 = pneg %p187
      $region38: #{down_pallas.1} parent=11 // pred_check_branch
        %248 = sbr.rel (%p246) target = $region40
      $region39: #{down_pallas.1} parent=11 // pred_region
        _
      $region40: #{down_pallas.1} parent=11 // pred_fallthru
        _
    $region12: #{down_pallas.1} parent=5 // pred_fallthru
      _
    %p249 = scmp.lt.s32.totalorder %s14, 2
    // Predicated region
    $region41: #{down_pallas.1} parent=5 // pred_check
      %p250 = pneg %p249
    $region42: #{down_pallas.1} parent=5 // pred_check_branch
      %252 = sbr.rel (%p250) target = $region44
    $region43: #{down_pallas.1} parent=5 // pred_region
      // Predicated region
      $region45: #{down_pallas.1} parent=43 // pred_check
        %p253 = pneg %p34
      $region46: #{down_pallas.1} parent=43 // pred_check_branch
        %255 = sbr.rel (%p253) target = $region48
      $region47: #{down_pallas.1} parent=43 // pred_region
        %p256 = scmp.lt.s32.totalorder %s14, 1
        %s257 = scalar_select %p256, %s14, 1
        %s258 = smul.addr %s257, 2
        %s259 = smul.addr %s258, 4
        %s260 = scalar_lea.vmem %s0, %s259
      $region48: #{down_pallas.1} parent=43 // pred_fallthru
        _
    $region44: #{down_pallas.1} parent=5 // pred_fallthru
      _
    %p261 = scmp.le.s32.totalorder 1, %s14
    %p262 = scmp.lt.s32.totalorder %s14, 3
    %p263 = pnand %p261, %p262
    %p264 = pneg %p263
    // Predicated region
    $region49: #{down_pallas.1} parent=5 // pred_check
      _
    $region50: #{down_pallas.1} parent=5 // pred_check_branch
      %266 = sbr.rel (%p263) target = $region52
    $region51: #{down_pallas.1} parent=5 // pred_region
      %s267 = ssub.s32 %s14, 1
      %p268 = scmp.lt.s32.totalorder %s19, 1
      %s269 = scalar_select %p268, %s19, 1
      %s270 = smul.addr %s269, 2
      %s271 = smul.addr %s270, 4
      %s272 = scalar_lea.vmem %s0, %s271
      %p273 = pneg %p40
      %p274 = pneg %p37
      %p275 = pneg %p61
      %p276 = pneg %p58
      %p277 = pneg %p82
      %p278 = pneg %p79
      %p279 = pneg %p103
      %p280 = pneg %p100
      %p281 = pneg %p124
      %p282 = pneg %p121
      %p283 = pneg %p145
      %p284 = pneg %p142
      %p285 = pneg %p166
      %p286 = pneg %p163
      %p287 = pneg %p187
      %p288 = pneg %p184
      %p289 = pneg %p213
      %p290 = pneg %p210
      %p291 = scmp.lt.s32.totalorder %s19, 1
      %s292 = scalar_select %p291, %s19, 1
      %s293 = smul.addr %s292, 8
      %s294 = scalar_lea.vmem %s8, %s293
      %p295 = scmp.lt.s32.totalorder %s19, 1
      %s296 = scalar_select %p295, %s19, 1
      %s297 = smul.addr %s296, 2
      %s298 = smul.addr %s297, 4
      %s299 = scalar_lea.vmem %s0, %s298
      %p300 = scmp.lt.s32.totalorder %s19, 1
      %s301 = scalar_select %p300, %s19, 1
      %s302 = smul.addr %s301, 8
      %s303 = scalar_lea.vmem %s8, %s302
      %v305 = vld [vmem:[%s7] sm:$0x1]
      %v306 = vld [vmem:[%s299] sm:$0xf]
      %v307 = vld [vmem:[%s299 + $0x4] sm:$0xf]
      %vm308 = vcmask 1044416
      %309 = vst.msk [vmem:[#allocation2] sm:$0xf] %vm308, 0
      %310 = vst.msk [vmem:[#allocation2 + $0xc] sm:$0xf] %vm308, 0
      %311 = vst.msk [vmem:[#allocation2 + $0x18] sm:$0xf] %vm308, 0
      %312 = vst.msk [vmem:[#allocation2 + $0x24] sm:$0xf] %vm308, 0
      %313 = vst.msk [vmem:[#allocation2 + $0x30] sm:$0xf] %vm308, 0
      %314 = vst.msk [vmem:[#allocation2 + $0x3c] sm:$0xf] %vm308, 0
      %vm315 = vcmask 585216
      %316 = vst.msk [vmem:[#allocation2 + $0x4] sm:$0xf] %vm315, 0
      %317 = vst.msk [vmem:[#allocation2 + $0x10] sm:$0xf] %vm315, 0
      %318 = vst.msk [vmem:[#allocation2 + $0x1c] sm:$0xf] %vm315, 0
      %319 = vst.msk [vmem:[#allocation2 + $0x28] sm:$0xf] %vm315, 0
      %320 = vst.msk [vmem:[#allocation2 + $0x34] sm:$0xf] %vm315, 0
      %321 = vst.msk [vmem:[#allocation2 + $0x40] sm:$0xf] %vm315, 0
      %vm322 = vcmask 519168
      %323 = vst.msk [vmem:[#allocation2 + $0x1c] sm:$0xf] %vm322, %v306
      %324 = vst.msk [vmem:[#allocation2 + $0x28] sm:$0xf] %vm322, %v307
      %v325 = vld [vmem:[#allocation2 + $0x18] sm:$0xff]
      %v326 = vld [vmem:[#allocation2 + $0x24] sm:$0xff]
      %v328 = vpack.i.b16 %v305, %v305
      %v330 = vperm.slane %v328, 0
      %v331 = vunpack.c.l.bf16 %v325
      %v332 = vunpack.c.h.bf16 %v325
      %v333 = vunpack.c.l.bf16 %v326
      %v334 = vunpack.c.h.bf16 %v326
      %v335 = vunpack.c.l.bf16 %v330
      %337 = vrot.lane.b32.xlu0 %v335, 127
      %v338 = vpop.permute.xlu0 %337
      %v340 = vmul.f32 %v331, %v338
      %v341 = vmul.f32 %v332, %v338
      %v342 = vmul.f32 %v333, %v338
      %v343 = vmul.f32 %v334, %v338
      %v344 = vpack.c.bf16 %v341, %v340
      %v345 = vpack.c.bf16 %v343, %v342
      %348 = vrot.lane.b32.xlu0 %v344, 1
      %v349 = vpop.permute.xlu0 %348
      %350 = vrot.lane.b32.xlu0 %v345, 1
      %v351 = vpop.permute.xlu0 %350
      %v352 = vrot.slane %v349, 4
      %v353 = vrot.slane %v351, 4
      %vm354 = vcmask 7168
      %v355 = vsel %vm354, %v349, %v352
      %v356 = vsel %vm354, %v351, %v353
      %359 = vst.msk [vmem:[#allocation2 + $0x4] sm:$0xf] %vm322, %v355
      %360 = vst.msk [vmem:[#allocation2 + $0x10] sm:$0xf] %vm322, %v356
      %v361 = vld [vmem:[#allocation2 + $0x1c] sm:$0xf]
      %v362 = vld [vmem:[#allocation2 + $0x28] sm:$0xf]
      %v363 = vshrl.u32 %v305, 16
      %v364 = vpack.i.b16 %v363, %v363
      %v366 = vperm.slane %v364, 0
      %v367 = vunpack.c.l.bf16 %v361
      %v368 = vunpack.c.l.bf16 %v362
      %v369 = vunpack.c.l.bf16 %v366
      %371 = vrot.lane.b32.xlu0 %v369, 1
      %v372 = vpop.permute.xlu0 %371
      %v374 = vmul.f32 %v367, %v372
      %v375 = vmul.f32 %v368, %v372
      %v376 = vpack.c.bf16 %v374, %v374
      %v377 = vpack.c.bf16 %v375, %v375
      %380 = vrot.lane.b32.xlu0 %v376, 127
      %v381 = vpop.permute.xlu0 %380
      %382 = vrot.lane.b32.xlu0 %v377, 127
      %v383 = vpop.permute.xlu0 %382
      %386 = vst.msk [vmem:[#allocation2 + $0x34] sm:$0xf] %vm322, %v381
      %387 = vst.msk [vmem:[#allocation2 + $0x40] sm:$0xf] %vm322, %v383
      %v388 = vld [vmem:[%s1] sm:$0xf]
      %v389 = vld [vmem:[%s1 + $0x4] sm:$0xf]
      %v390 = vld [vmem:[#allocation2] sm:$0xff]
      %v391 = vld [vmem:[#allocation2 + $0xc] sm:$0xff]
      %v392 = vld [vmem:[#allocation2 + $0x18] sm:$0xff]
      %v393 = vld [vmem:[#allocation2 + $0x24] sm:$0xff]
      %v394 = vld [vmem:[#allocation2 + $0x30] sm:$0xff]
      %v395 = vld [vmem:[#allocation2 + $0x3c] sm:$0xff]
      %s396 = scalar_lea.vmem %s1, 8
      %v397 = vld [vmem:[%s396] sm:$0xf]
      %v398 = vld [vmem:[%s396 + $0x4] sm:$0xf]
      %v399 = vld [vmem:[#allocation2 + $0x4] sm:$0xf]
      %v400 = vld [vmem:[#allocation2 + $0x10] sm:$0xf]
      %v401 = vld [vmem:[#allocation2 + $0x1c] sm:$0xf]
      %v402 = vld [vmem:[#allocation2 + $0x28] sm:$0xf]
      %v403 = vld [vmem:[#allocation2 + $0x34] sm:$0xf]
      %v404 = vld [vmem:[#allocation2 + $0x40] sm:$0xf]
      %v407 = vunpack.c.l.b16 %v397
      %v408 = vunpack.c.l.b16 %v398
      %v409 = vpack.c.b16 %v408, %v407
      %v416 = vunpack.c.l.b16 %v399
      %v417 = vunpack.c.l.b16 %v400
      %v418 = vunpack.c.l.b16 %v401
      %v419 = vunpack.c.l.b16 %v402
      %v420 = vunpack.c.l.b16 %v403
      %v421 = vunpack.c.l.b16 %v404
      %v422 = vpack.c.b16 %v417, %v416
      %v423 = vpack.c.b16 %v419, %v418
      %v424 = vpack.c.b16 %v421, %v420
      %vm428 = vcmask 392192
      %v430 = vsel %vm428, %v409, 0
      %432 = vmatpush.bf16.msra.mxu0 0
      %433 = vmatpush.bf16.msra.mxu0 0
      %434 = vmatpush.bf16.msra.mxu0 0
      %435 = vmatpush.bf16.msra.mxu0 0
      %436 = vmatpush.bf16.msra.mxu0 0
      %437 = vmatpush.bf16.msra.mxu0 %v424
      %438 = vmatpush.bf16.msra.mxu0 %v423
      %439 = vmatpush.bf16.msra.mxu0 %v422
      %440 = vmatmul.bf16.gmra.mxu0 %v430
      %v441 = vpop.f32.mrf.mxu0
      %v442 = vadd.f32 0.0, %v441
      %v443 = vpop.f32.mrf.mxu0
      %v444 = vadd.f32 0.0, %v443
      %445 = vdwg.mxu0
      %v448 = vunpack.c.l.b16 %v388
      %v449 = vunpack.c.l.b16 %v389
      %v450 = vpack.c.b16 %v449, %v448
      %v457 = vunpack.c.l.b16 %v390
      %v458 = vunpack.c.h.b16 %v390
      %v459 = vunpack.c.l.b16 %v391
      %v460 = vunpack.c.h.b16 %v391
      %v461 = vunpack.c.l.b16 %v392
      %v462 = vunpack.c.h.b16 %v392
      %v463 = vunpack.c.l.b16 %v393
      %v464 = vunpack.c.h.b16 %v393
      %v465 = vunpack.c.l.b16 %v394
      %v466 = vunpack.c.h.b16 %v394
      %v467 = vunpack.c.l.b16 %v395
      %v468 = vunpack.c.h.b16 %v395
      %v469 = vpack.c.b16 %v459, %v457
      %v470 = vpack.c.b16 %v460, %v458
      %v471 = vpack.c.b16 %v463, %v461
      %v472 = vpack.c.b16 %v464, %v462
      %v473 = vpack.c.b16 %v467, %v465
      %v474 = vpack.c.b16 %v468, %v466
      %475 = vrot.lane.b32.xlu0 %v469, 8
      %v476 = vpop.permute.xlu0 %475
      %477 = vrot.lane.b32.xlu0 %v470, 8
      %v478 = vpop.permute.xlu0 %477
      %479 = vrot.lane.b32.xlu0 %v471, 8
      %v480 = vpop.permute.xlu0 %479
      %481 = vrot.lane.b32.xlu0 %v472, 8
      %v482 = vpop.permute.xlu0 %481
      %483 = vrot.lane.b32.xlu0 %v473, 8
      %v484 = vpop.permute.xlu0 %483
      %485 = vrot.lane.b32.xlu0 %v474, 8
      %v486 = vpop.permute.xlu0 %485
      %vm487 = vcmask 64512
      %v488 = vsel %vm487, %v476, %v478
      %v489 = vsel %vm487, %v480, %v482
      %v490 = vsel %vm487, %v484, %v486
      %v495 = vsel %vm428, %v450, 0
      %497 = vmatpush.bf16.msra.mxu0 0
      %498 = vmatpush.bf16.msra.mxu0 0
      %499 = vmatpush.bf16.msra.mxu0 0
      %500 = vmatpush.bf16.msra.mxu0 0
      %501 = vmatpush.bf16.msra.mxu0 0
      %502 = vmatpush.bf16.msra.mxu0 %v490
      %503 = vmatpush.bf16.msra.mxu0 %v489
      %504 = vmatpush.bf16.msra.mxu0 %v488
      %505 = vmatmul.bf16.gmra.mxu0 %v495
      %v506 = vpop.f32.mrf.mxu0
      %v507 = vadd.f32 %v442, %v506
      %v508 = vpop.f32.mrf.mxu0
      %v509 = vadd.f32 %v444, %v508
      %510 = vdwg.mxu0
      %s511 = scalar_lea.vmem %s1, 16
      %v512 = vld [vmem:[%s511] sm:$0xf]
      %v513 = vld [vmem:[%s511 + $0x4] sm:$0xf]
      %v516 = vunpack.c.l.b16 %v512
      %v517 = vunpack.c.l.b16 %v513
      %v518 = vpack.c.b16 %v517, %v516
      %519 = vrot.lane.b32.xlu0 %v422, 120
      %v520 = vpop.permute.xlu0 %519
      %521 = vrot.lane.b32.xlu0 %v423, 120
      %v522 = vpop.permute.xlu0 %521
      %523 = vrot.lane.b32.xlu0 %v424, 120
      %v524 = vpop.permute.xlu0 %523
      %v529 = vsel %vm428, %v518, 0
      %531 = vmatpush.bf16.msra.mxu0 0
      %532 = vmatpush.bf16.msra.mxu0 0
      %533 = vmatpush.bf16.msra.mxu0 0
      %534 = vmatpush.bf16.msra.mxu0 0
      %535 = vmatpush.bf16.msra.mxu0 0
      %536 = vmatpush.bf16.msra.mxu0 %v524
      %537 = vmatpush.bf16.msra.mxu0 %v522
      %538 = vmatpush.bf16.msra.mxu0 %v520
      %539 = vmatmul.bf16.gmra.mxu0 %v529
      %v540 = vpop.f32.mrf.mxu0
      %v541 = vadd.f32 0.0, %v540
      %v542 = vpop.f32.mrf.mxu0
      %v543 = vadd.f32 0.0, %v542
      %544 = vdwg.mxu0
      %v545 = vadd.f32 %v507, %v541
      %v546 = vadd.f32 %v509, %v543
      %v547 = vld [vmem:[%s2] sm:$0xff]
      %v548 = vld [vmem:[%s2 + $0x8] sm:$0xff]
      %v549 = vld [vmem:[%s3] sm:$0xff]
      %v550 = vld [vmem:[%s3 + $0x8] sm:$0xff]
      %vm551 = vcmask 523264
      %v552 = vsel %vm551, %v545, 0.0
      %553 = vadd.xlane.f32.xlu0 %v552
      %v554 = vpop.xlane.xlu0 %553
      %v555 = vsel %vm551, %v546, 0.0
      %556 = vadd.xlane.f32.xlu0 %v555
      %v557 = vpop.xlane.xlu0 %556
      %v558 = vmul.f32 %v554, 0.015625
      %v559 = vmul.f32 %v557, 0.015625
      %v560 = vsub.f32 %v545, %v558
      %v561 = vsub.f32 %v546, %v559
      %v562 = vmul.f32 %v560, %v560
      %v563 = vmul.f32 %v561, %v561
      %v564 = vsel %vm551, %v562, 0.0
      %565 = vadd.xlane.f32.xlu0 %v564
      %v566 = vpop.xlane.xlu0 %565
      %v567 = vsel %vm551, %v563, 0.0
      %568 = vadd.xlane.f32.xlu0 %v567
      %v569 = vpop.xlane.xlu0 %568
      %v570 = vmul.f32 %v566, 0.015625
      %v571 = vmul.f32 %v569, 0.015625
      %v572 = vadd.f32 %v570, 1e-05
      %v573 = vadd.f32 %v571, 1e-05
      %v574 = vrsqrt.pop %v572
      %v575 = vmul.f32 %v574, %v572
      %v576 = vmul.f32 %v575, %v574
      %v577 = vmul.f32 0.5, %v576
      %v578 = vsub.f32 1.5, %v577
      %v579 = vmul.f32 %v574, %v578
      %vm580 = vweird.f32 %v572
      %vm581 = vweird.f32 %v574
      %vm582 = vmor %vm580, %vm581
      %v583 = vsel %vm582, %v574, %v579
      %v584 = vrsqrt.pop %v573
      %v585 = vmul.f32 %v584, %v573
      %v586 = vmul.f32 %v585, %v584
      %v587 = vmul.f32 0.5, %v586
      %v588 = vsub.f32 1.5, %v587
      %v589 = vmul.f32 %v584, %v588
      %vm590 = vweird.f32 %v573
      %vm591 = vweird.f32 %v584
      %vm592 = vmor %vm590, %vm591
      %v593 = vsel %vm592, %v584, %v589
      %v594 = vmul.f32 %v560, %v583
      %v595 = vmul.f32 %v561, %v593
      %597 = vset.pattern.permute.xlu0 0
      %598 = vperm.xlu0 %597, %v547
      %v599 = vpop.permute.xlu0 %598
      %602 = vset.pattern.permute.xlu0 0
      %603 = vperm.xlu0 %602, %v548
      %v604 = vpop.permute.xlu0 %603
      %v606 = vmul.f32 %v594, %v599
      %v607 = vmul.f32 %v595, %v604
      %609 = vset.pattern.permute.xlu0 0
      %610 = vperm.xlu0 %609, %v549
      %v611 = vpop.permute.xlu0 %610
      %614 = vset.pattern.permute.xlu0 0
      %615 = vperm.xlu0 %614, %v550
      %v616 = vpop.permute.xlu0 %615
      %v618 = vadd.f32 %v606, %v611
      %v619 = vadd.f32 %v607, %v616
      %v620 = vmax.f32 %v618, 0.0
      %v621 = vmax.f32 %v619, 0.0
      %v622 = vpack.c.bf16 %v620, %v620
      %v623 = vpack.c.bf16 %v621, %v621
      %624 = vst.msk [vmem:[#allocation3] sm:$0xf] %vm308, 0
      %625 = vst.msk [vmem:[#allocation3 + $0xc] sm:$0xf] %vm308, 0
      %626 = vst.msk [vmem:[#allocation3 + $0x18] sm:$0xf] %vm308, 0
      %627 = vst.msk [vmem:[#allocation3 + $0x24] sm:$0xf] %vm308, 0
      %628 = vst.msk [vmem:[#allocation3 + $0x30] sm:$0xf] %vm308, 0
      %629 = vst.msk [vmem:[#allocation3 + $0x3c] sm:$0xf] %vm308, 0
      %630 = vst.msk [vmem:[#allocation3 + $0x4] sm:$0xf] %vm315, 0
      %631 = vst.msk [vmem:[#allocation3 + $0x10] sm:$0xf] %vm315, 0
      %632 = vst.msk [vmem:[#allocation3 + $0x1c] sm:$0xf] %vm315, 0
      %633 = vst.msk [vmem:[#allocation3 + $0x28] sm:$0xf] %vm315, 0
      %634 = vst.msk [vmem:[#allocation3 + $0x34] sm:$0xf] %vm315, 0
      %635 = vst.msk [vmem:[#allocation3 + $0x40] sm:$0xf] %vm315, 0
      %636 = vst.msk [vmem:[#allocation3 + $0x1c] sm:$0xf] %vm322, %v622
      %637 = vst.msk [vmem:[#allocation3 + $0x28] sm:$0xf] %vm322, %v623
      %v638 = vld [vmem:[#allocation3 + $0x18] sm:$0xff]
      %v639 = vld [vmem:[#allocation3 + $0x24] sm:$0xff]
      %v640 = vunpack.c.l.bf16 %v638
      %v641 = vunpack.c.h.bf16 %v638
      %v642 = vunpack.c.l.bf16 %v639
      %v643 = vunpack.c.h.bf16 %v639
      %v644 = vmul.f32 %v640, %v338
      %v645 = vmul.f32 %v641, %v338
      %v646 = vmul.f32 %v642, %v338
      %v647 = vmul.f32 %v643, %v338
      %v648 = vpack.c.bf16 %v645, %v644
      %v649 = vpack.c.bf16 %v647, %v646
      %652 = vrot.lane.b32.xlu0 %v648, 1
      %v653 = vpop.permute.xlu0 %652
      %654 = vrot.lane.b32.xlu0 %v649, 1
      %v655 = vpop.permute.xlu0 %654
      %v656 = vrot.slane %v653, 4
      %v657 = vrot.slane %v655, 4
      %v658 = vsel %vm354, %v653, %v656
      %v659 = vsel %vm354, %v655, %v657
      %662 = vst.msk [vmem:[#allocation3 + $0x4] sm:$0xf] %vm322, %v658
      %663 = vst.msk [vmem:[#allocation3 + $0x10] sm:$0xf] %vm322, %v659
      %v664 = vld [vmem:[#allocation3 + $0x1c] sm:$0xf]
      %v665 = vld [vmem:[#allocation3 + $0x28] sm:$0xf]
      %v666 = vunpack.c.l.bf16 %v664
      %v667 = vunpack.c.l.bf16 %v665
      %v668 = vmul.f32 %v666, %v372
      %v669 = vmul.f32 %v667, %v372
      %v670 = vpack.c.bf16 %v668, %v668
      %v671 = vpack.c.bf16 %v669, %v669
      %674 = vrot.lane.b32.xlu0 %v670, 127
      %v675 = vpop.permute.xlu0 %674
      %676 = vrot.lane.b32.xlu0 %v671, 127
      %v677 = vpop.permute.xlu0 %676
      %680 = vst.msk [vmem:[#allocation3 + $0x34] sm:$0xf] %vm322, %v675
      %681 = vst.msk [vmem:[#allocation3 + $0x40] sm:$0xf] %vm322, %v677
      %v682 = vld [vmem:[%s4] sm:$0xf]
      %v683 = vld [vmem:[#allocation3] sm:$0xff]
      %v684 = vld [vmem:[#allocation3 + $0xc] sm:$0xff]
      %v685 = vld [vmem:[#allocation3 + $0x18] sm:$0xff]
      %v686 = vld [vmem:[#allocation3 + $0x24] sm:$0xff]
      %v687 = vld [vmem:[#allocation3 + $0x30] sm:$0xff]
      %v688 = vld [vmem:[#allocation3 + $0x3c] sm:$0xff]
      %s689 = scalar_lea.vmem %s4, 4
      %v690 = vld [vmem:[%s689] sm:$0xf]
      %v691 = vld [vmem:[#allocation3 + $0x4] sm:$0xf]
      %v692 = vld [vmem:[#allocation3 + $0x10] sm:$0xf]
      %v693 = vld [vmem:[#allocation3 + $0x1c] sm:$0xf]
      %v694 = vld [vmem:[#allocation3 + $0x28] sm:$0xf]
      %v695 = vld [vmem:[#allocation3 + $0x34] sm:$0xf]
      %v696 = vld [vmem:[#allocation3 + $0x40] sm:$0xf]
      %v703 = vunpack.c.l.b16 %v691
      %v704 = vunpack.c.l.b16 %v692
      %v705 = vunpack.c.l.b16 %v693
      %v706 = vunpack.c.l.b16 %v694
      %v707 = vunpack.c.l.b16 %v695
      %v708 = vunpack.c.l.b16 %v696
      %v709 = vpack.c.b16 %v704, %v703
      %v710 = vpack.c.b16 %v706, %v705
      %v711 = vpack.c.b16 %v708, %v707
      %v716 = vsel %vm428, %v690, 0
      %718 = vmatpush.bf16.msra.mxu0 0
      %719 = vmatpush.bf16.msra.mxu0 0
      %720 = vmatpush.bf16.msra.mxu0 0
      %721 = vmatpush.bf16.msra.mxu0 0
      %722 = vmatpush.bf16.msra.mxu0 0
      %723 = vmatpush.bf16.msra.mxu0 %v711
      %724 = vmatpush.bf16.msra.mxu0 %v710
      %725 = vmatpush.bf16.msra.mxu0 %v709
      %726 = vmatmul.bf16.gmra.mxu0 %v716
      %v727 = vpop.f32.mrf.mxu0
      %v728 = vadd.f32 0.0, %v727
      %v729 = vpop.f32.mrf.mxu0
      %730 = vdwg.mxu0
      %v737 = vunpack.c.l.b16 %v683
      %v738 = vunpack.c.h.b16 %v683
      %v739 = vunpack.c.l.b16 %v684
      %v740 = vunpack.c.h.b16 %v684
      %v741 = vunpack.c.l.b16 %v685
      %v742 = vunpack.c.h.b16 %v685
      %v743 = vunpack.c.l.b16 %v686
      %v744 = vunpack.c.h.b16 %v686
      %v745 = vunpack.c.l.b16 %v687
      %v746 = vunpack.c.h.b16 %v687
      %v747 = vunpack.c.l.b16 %v688
      %v748 = vunpack.c.h.b16 %v688
      %v749 = vpack.c.b16 %v739, %v737
      %v750 = vpack.c.b16 %v740, %v738
      %v751 = vpack.c.b16 %v743, %v741
      %v752 = vpack.c.b16 %v744, %v742
      %v753 = vpack.c.b16 %v747, %v745
      %v754 = vpack.c.b16 %v748, %v746
      %755 = vrot.lane.b32.xlu0 %v749, 8
      %v756 = vpop.permute.xlu0 %755
      %757 = vrot.lane.b32.xlu0 %v750, 8
      %v758 = vpop.permute.xlu0 %757
      %759 = vrot.lane.b32.xlu0 %v751, 8
      %v760 = vpop.permute.xlu0 %759
      %761 = vrot.lane.b32.xlu0 %v752, 8
      %v762 = vpop.permute.xlu0 %761
      %763 = vrot.lane.b32.xlu0 %v753, 8
      %v764 = vpop.permute.xlu0 %763
      %765 = vrot.lane.b32.xlu0 %v754, 8
      %v766 = vpop.permute.xlu0 %765
      %v767 = vsel %vm487, %v756, %v758
      %v768 = vsel %vm487, %v760, %v762
      %v769 = vsel %vm487, %v764, %v766
      %v774 = vsel %vm428, %v682, 0
      %776 = vmatpush.bf16.msra.mxu0 0
      %777 = vmatpush.bf16.msra.mxu0 0
      %778 = vmatpush.bf16.msra.mxu0 0
      %779 = vmatpush.bf16.msra.mxu0 0
      %780 = vmatpush.bf16.msra.mxu0 0
      %781 = vmatpush.bf16.msra.mxu0 %v769
      %782 = vmatpush.bf16.msra.mxu0 %v768
      %783 = vmatpush.bf16.msra.mxu0 %v767
      %784 = vmatmul.bf16.gmra.mxu0 %v774
      %v785 = vpop.f32.mrf.mxu0
      %v786 = vadd.f32 %v728, %v785
      %v787 = vpop.f32.mrf.mxu0
      %788 = vdwg.mxu0
      %s789 = scalar_lea.vmem %s4, 8
      %v790 = vld [vmem:[%s789] sm:$0xf]
      %791 = vrot.lane.b32.xlu0 %v709, 120
      %v792 = vpop.permute.xlu0 %791
      %793 = vrot.lane.b32.xlu0 %v710, 120
      %v794 = vpop.permute.xlu0 %793
      %795 = vrot.lane.b32.xlu0 %v711, 120
      %v796 = vpop.permute.xlu0 %795
      %v801 = vsel %vm428, %v790, 0
      %803 = vmatpush.bf16.msra.mxu0 0
      %804 = vmatpush.bf16.msra.mxu0 0
      %805 = vmatpush.bf16.msra.mxu0 0
      %806 = vmatpush.bf16.msra.mxu0 0
      %807 = vmatpush.bf16.msra.mxu0 0
      %808 = vmatpush.bf16.msra.mxu0 %v796
      %809 = vmatpush.bf16.msra.mxu0 %v794
      %810 = vmatpush.bf16.msra.mxu0 %v792
      %811 = vmatmul.bf16.gmra.mxu0 %v801
      %v812 = vpop.f32.mrf.mxu0
      %v813 = vadd.f32 0.0, %v812
      %v814 = vpop.f32.mrf.mxu0
      %815 = vdwg.mxu0
      %v816 = vadd.f32 %v786, %v813
      %v817 = vld [vmem:[%s5] sm:$0xff]
      %v818 = vld [vmem:[%s6] sm:$0xff]
      %v819 = vsel %vm551, %v816, 0.0
      %820 = vadd.xlane.f32.xlu0 %v819
      %v821 = vpop.xlane.xlu0 %820
      %v822 = vmul.f32 %v821, 0.015625
      %v823 = vsub.f32 %v816, %v822
      %v824 = vmul.f32 %v823, %v823
      %v825 = vsel %vm551, %v824, 0.0
      %826 = vadd.xlane.f32.xlu0 %v825
      %v827 = vpop.xlane.xlu0 %826
      %v828 = vmul.f32 %v827, 0.015625
      %v829 = vadd.f32 %v828, 1e-05
      %v830 = vrsqrt.pop %v829
      %v831 = vmul.f32 %v830, %v829
      %v832 = vmul.f32 %v831, %v830
      %v833 = vmul.f32 0.5, %v832
      %v834 = vsub.f32 1.5, %v833
      %v835 = vmul.f32 %v830, %v834
      %vm836 = vweird.f32 %v829
      %vm837 = vweird.f32 %v830
      %vm838 = vmor %vm836, %vm837
      %v839 = vsel %vm838, %v830, %v835
      %v840 = vmul.f32 %v823, %v839
      %842 = vset.pattern.permute.xlu0 0
      %843 = vperm.xlu0 %842, %v817
      %v844 = vpop.permute.xlu0 %843
      %v846 = vmul.f32 %v840, %v844
      %848 = vset.pattern.permute.xlu0 0
      %849 = vperm.xlu0 %848, %v818
      %v850 = vpop.permute.xlu0 %849
      %v852 = vadd.f32 %v846, %v850
      %v853 = vmax.f32 %v852, 0.0
      %854 = vst.msk [vmem:[%s303] sm:$0xff] %vm551, %v853
      %p855 = scmp.lt.s32.totalorder %s19, 1
      %s856 = scalar_select %p855, %s19, 1
      %s857 = smul.addr %s856, 8
      %s858 = scalar_lea.vmem %s8, %s857
      // Predicated region
      $region53: #{down_pallas.1} parent=51 // pred_check
        %p859 = pneg %p210
      $region54: #{down_pallas.1} parent=51 // pred_check_branch
        %861 = sbr.rel (%p859) target = $region56
      $region55: #{down_pallas.1} parent=51 // pred_region
        _
      $region56: #{down_pallas.1} parent=51 // pred_fallthru
        _
    $region52: #{down_pallas.1} parent=5 // pred_fallthru
      _
    %p862 = scmp.le.s32.totalorder 2, %s14
    // Predicated region
    $region57: #{down_pallas.1} parent=5 // pred_check
      %p863 = pneg %p862
    $region58: #{down_pallas.1} parent=5 // pred_check_branch
      %865 = sbr.rel (%p863) target = $region60
    $region59: #{down_pallas.1} parent=5 // pred_region
      %s866 = ssub.s32 %s14, 2
      // Predicated region
      $region61: #{down_pallas.1} parent=59 // pred_check
        %p867 = pneg %p216
      $region62: #{down_pallas.1} parent=59 // pred_check_branch
        %869 = sbr.rel (%p867) target = $region64
      $region63: #{down_pallas.1} parent=59 // pred_region
        %p870 = scmp.lt.s32.totalorder %s20, 1
        %s871 = scalar_select %p870, %s20, 1
        %s872 = smul.addr %s871, 8
        %s873 = scalar_lea.vmem %s8, %s872
      $region64: #{down_pallas.1} parent=59 // pred_fallthru
        _
    $region60: #{down_pallas.1} parent=5 // pred_fallthru
      _
  $region6: #{down_pallas.1} parent=0 // loop_footer
    %s18 = sadd.s32 1, %s14
  $region7: #{down_pallas.1} parent=0 // loop_footer_branch
    %13 = sbr.rel target = $region3
  $region8: #{down_pallas.1} parent=0 // loop_exit
    _

</llo_original>
